<compile_context>
chip_gen: v5e
topology: v5e:2x2
jax: 0.10.0
libtpu: 0.0.40
codegen_flags: <defaults>
</compile_context>

<pallas_src>
import math

import jax
import jax.numpy as jnp
from jax.experimental import pallas as pl
from jax.experimental.pallas import tpu as pltpu


LANE = 128
SUBLANE = 8


def _round_up(v, m):
    return ((v + m - 1) // m) * m


def gnn_kernel(a_ref, pa_ref, xw1_ref, b1_ref, w2h_ref, bc_ref,
               o_ref, h1_ref, acc_ref):
    """Fused 2-layer GCN + mean-pool + linear head, tiled over (row, k).

    a_ref   : [TM, TK]           bf16  tile of normalized adjacency (w/ self loops)
    pa_ref  : [G_pad, TM]        bf16  columns of (mean-pool @ A_norm) for this row tile
    xw1_ref : [TK, H_pad]        bf16  k-tile of the hoisted X @ W1
    b1_ref  : [1, H_pad]         f32
    w2h_ref : [H_pad, Cout_pad]  bf16  folded W2 @ Wh
    bc_ref  : [1, Cout_pad]      f32   folded b2 @ Wh + bh
    o_ref   : [G_pad, Cout_pad]  f32   lane-dense output block (resident)
    h1_ref  : [TM, H_pad]        f32   scratch: layer-1 accumulator for this row tile
    acc_ref : [G_pad, H_pad]     f32   scratch: pooled hidden-feature accumulator
    """
    i = pl.program_id(0)          # row tile of A (nodes)
    k = pl.program_id(1)          # contraction tile of A (neighbour nodes)
    n_i = pl.num_programs(0)
    n_k = pl.num_programs(1)

    @pl.when(jnp.logical_and(i == 0, k == 0))
    def _init_acc():
        acc_ref[...] = jnp.zeros_like(acc_ref)

    @pl.when(k == 0)
    def _init_h1():
        h1_ref[...] = jnp.zeros_like(h1_ref)

    # --- GCNConv layer 1 aggregation, k-tiled:  h1 += A[:,k] @ (X W1)[k,:] ---
    h1_ref[...] += jnp.dot(a_ref[...], xw1_ref[...],
                           preferred_element_type=jnp.float32)

    # --- bias + ReLU + folded mean pool, once per row tile --------------------
    @pl.when(k == n_k - 1)
    def _pool():
        h1 = jnp.maximum(h1_ref[...] + b1_ref[...], 0.0)   # f32 on the VPU
        # TODO(synk): inter-layer dropout is identity in eval mode.
        acc_ref[...] += jnp.dot(pa_ref[...], h1.astype(pa_ref.dtype),
                                preferred_element_type=jnp.float32)

    # --- folded layer-2 weight + linear head, once per batch ------------------
    @pl.when(jnp.logical_and(i == n_i - 1, k == n_k - 1))
    def _finalize():
        o_ref[...] = (jnp.dot(acc_ref[...].astype(w2h_ref.dtype), w2h_ref[...],
                              preferred_element_type=jnp.float32)
                      + bc_ref[...]).astype(o_ref.dtype)


def precompute_graph_operators(edge_index, batch_idx, num_nodes, num_graphs):
    """Dense normalized adjacency A_norm and mean-pool matrix P.

    These depend only on the (static) graph structure of a batch — cache and
    reuse them when repeatedly evaluating the same batch.
    """
    src, dst = edge_index[0], edge_index[1]
    n = num_nodes
    # scatter-ADD so multi-edges are counted (matches PyG gcn_norm semantics).
    adj = jnp.zeros((n, n), jnp.float32).at[dst, src].add(1.0)
    adj = adj + jnp.eye(n, dtype=jnp.float32)                 # self loops
    deg = adj.sum(axis=1)
    d_inv_sqrt = jnp.where(deg > 0.0, jax.lax.rsqrt(deg), 0.0)
    a_norm = d_inv_sqrt[:, None] * adj * d_inv_sqrt[None, :]

    onehot = (batch_idx[None, :] == jnp.arange(num_graphs)[:, None]
              ).astype(jnp.float32)
    counts = jnp.maximum(onehot.sum(axis=1, keepdims=True), 1.0)
    pool_mat = onehot / counts                                # [G, N]
    return a_norm, pool_mat


def _default_tiles_and_vmem():
    """Generation-aware defaults: bigger tiles on 128 MiB chips, smaller on v7x."""
    vmem_physical = 128 << 20
    try:
        info = pltpu.get_tpu_info()
        vmem_physical = int(getattr(info, "vmem_capacity_bytes", vmem_physical))
    except Exception:
        vmem_physical = 64 << 20          # conservative (v7x-sized) fallback
    if vmem_physical >= (100 << 20):      # v5e / v6e: 128 MiB VMEM
        return 512, 512, vmem_physical
    return 256, 256, vmem_physical        # v7x: 64 MiB physical VMEM


def graph_level_gnn_forward(x, edge_index, batch_idx, params, num_graphs,
                            *, tile_m=None, tile_k=None):
    """GraphLevelGNN.forward (eval mode): GCN x2 -> mean pool -> Linear -> squeeze."""
    n, c_in = x.shape
    w1, b1, w2, b2, wh, bh = params
    c_hidden = w1.shape[1]
    c_out = wh.shape[1]

    a_norm, pool_mat = precompute_graph_operators(edge_index, batch_idx, n,
                                                  num_graphs)

    # ---- algebraic folding (layer 2 + head + pooling constants) ------------
    w2h = w2 @ wh                    # [H, c_out]
    bias_c = b2 @ wh + bh            # [1, c_out]   (mean-pool rows sum to 1)
    pa = pool_mat @ a_norm           # [G, N]

    # ---- hoisted input projection: X @ W1 (bf16 MXU inputs, f32 accum) -----
    xw1 = jnp.dot(x.astype(jnp.bfloat16), w1.astype(jnp.bfloat16),
                  preferred_element_type=jnp.float32).astype(jnp.bfloat16)

    # ---- tile sizing + padding to (8, 128)-aligned shapes -------------------
    def_tm, def_tk, vmem_physical = _default_tiles_and_vmem()
    tile_m = def_tm if tile_m is None else tile_m
    tile_k = def_tk if tile_k is None else tile_k
    assert tile_m % LANE == 0 and tile_k % LANE == 0

    n_lane = _round_up(n, LANE)
    tm = min(tile_m, n_lane)
    tk = min(tile_k, n_lane)
    n_pad = _round_up(n, math.lcm(tm, tk))
    h_pad = _round_up(c_hidden, LANE)
    cout_pad = _round_up(c_out, LANE)
    g_pad = _round_up(num_graphs, SUBLANE)
    n_row_tiles = n_pad // tm
    n_k_tiles = n_pad // tk

    a_p = jnp.pad(a_norm, ((0, n_pad - n), (0, n_pad - n))).astype(jnp.bfloat16)
    pa_p = jnp.pad(pa, ((0, g_pad - num_graphs), (0, n_pad - n))).astype(jnp.bfloat16)
    xw1_p = jnp.pad(xw1, ((0, n_pad - n), (0, h_pad - c_hidden)))
    b1_p = jnp.pad(b1, ((0, 0), (0, h_pad - c_hidden))).astype(jnp.float32)
    w2h_p = jnp.pad(w2h, ((0, h_pad - c_hidden), (0, cout_pad - c_out))).astype(jnp.bfloat16)
    bc_p = jnp.pad(bias_c, ((0, 0), (0, cout_pad - c_out))).astype(jnp.float32)

    # ---- VMEM budget (double-buffered inputs + scratch) + explicit limit ----
    step_vmem = (2 * tm * tk * 2                    # A tile
                 + 2 * g_pad * tm * 2               # (P@A) column tile
                 + 2 * tk * h_pad * 2               # XW1 k-tile
                 + 2 * (h_pad * 4 + h_pad * cout_pad * 2 + cout_pad * 4)
                 + 2 * g_pad * cout_pad * 4         # output block
                 + tm * h_pad * 4                   # h1 scratch
                 + g_pad * h_pad * 4)               # pooled accumulator
    vmem_cap = int(0.75 * vmem_physical)
    vmem_limit = int(min(vmem_cap, max(32 << 20, 2 * step_vmem)))

    # ---- cost hint for XLA scheduling ---------------------------------------
    flops = 2 * (n_pad * n_pad * h_pad             # A @ (X W1)
                 + g_pad * n_pad * h_pad           # (P A) @ relu(.)
                 + g_pad * h_pad * cout_pad)       # acc @ (W2 Wh)
    bytes_accessed = sum(int(t.size) * t.dtype.itemsize
                         for t in (a_p, pa_p, xw1_p, b1_p, w2h_p, bc_p))
    bytes_accessed += g_pad * cout_pad * 4

    out_pad = pl.pallas_call(
        gnn_kernel,
        out_shape=jax.ShapeDtypeStruct((g_pad, cout_pad), jnp.float32),
        grid_spec=pltpu.PrefetchScalarGridSpec(
            num_scalar_prefetch=0,
            grid=(n_row_tiles, n_k_tiles),
            in_specs=[
                pl.BlockSpec((tm, tk), lambda i, k: (i, k)),         # A tile
                pl.BlockSpec((g_pad, tm), lambda i, k: (0, i)),      # (P@A) cols
                pl.BlockSpec((tk, h_pad), lambda i, k: (k, 0)),      # X@W1 k-tile
                pl.BlockSpec((1, h_pad), lambda i, k: (0, 0)),       # b1
                pl.BlockSpec((h_pad, cout_pad), lambda i, k: (0, 0)),  # W2 @ Wh
                pl.BlockSpec((1, cout_pad), lambda i, k: (0, 0)),    # b2@Wh + bh
            ],
            out_specs=pl.BlockSpec((g_pad, cout_pad), lambda i, k: (0, 0)),
            scratch_shapes=[
                pltpu.VMEM((tm, h_pad), jnp.float32),       # h1 (layer-1 acc)
                pltpu.VMEM((g_pad, h_pad), jnp.float32),    # pooled accumulator
            ],
        ),
        # Both axes reduce into persistent scratch (acc / h1), so both must be
        # sequential ("arbitrary").  See TODO at the top for v7x dual-TC split.
        compiler_params=pltpu.CompilerParams(
            dimension_semantics=("arbitrary", "arbitrary"),
            vmem_limit_bytes=vmem_limit),
        cost_estimate=pl.CostEstimate(flops=flops, transcendentals=0,
                                      bytes_accessed=bytes_accessed),
    )(a_p, pa_p, xw1_p, b1_p, w2h_p, bc_p)

    out = out_pad[:num_graphs, :c_out]
    # torch .squeeze(dim=-1): only squeezes when the last dim is 1.
    return out[:, 0] if c_out == 1 else out


def init_params(key, c_in, c_hidden, c_out):
    k1, k2, k3 = jax.random.split(key, 3)
    # Glorot-style deterministic init (synthetic weights, not a checkpoint).
    w1 = jax.random.normal(k1, (c_in, c_hidden), jnp.float32) * (2.0 / (c_in + c_hidden)) ** 0.5
    b1 = jnp.zeros((1, c_hidden), jnp.float32)
    w2 = jax.random.normal(k2, (c_hidden, c_hidden), jnp.float32) * (1.0 / c_hidden) ** 0.5
    b2 = jnp.zeros((1, c_hidden), jnp.float32)
    wh = jax.random.normal(k3, (c_hidden, c_out), jnp.float32) * (2.0 / (c_hidden + c_out)) ** 0.5
    bh = jnp.zeros((1, c_out), jnp.float32)
    return (w1, b1, w2, b2, wh, bh)


if __name__ == "__main__":
    key = jax.random.PRNGKey(0)
    kx, kp = jax.random.split(key)

    # Small synthetic batched graph: 16 nodes split across 2 graphs,
    # c_in=8 node features, c_hidden=32, c_out=1 (graph-level scalar).
    N, C_IN, C_HIDDEN, C_OUT, G = 16, 8, 32, 1, 2

    x = jax.random.normal(kx, (N, C_IN), jnp.float32)

    # Deterministic undirected edges (ring within each graph of 8 nodes).
    edges = []
    for g in range(G):
        base = g * 8
        for i in range(8):
            a, b = base + i, base + (i + 1) % 8
            edges.append((a, b))
            edges.append((b, a))
    edge_index = jnp.array(edges, dtype=jnp.int32).T           # [2, E]
    batch_idx = jnp.array([0] * 8 + [1] * 8, dtype=jnp.int32)   # [N]

    params = init_params(kp, C_IN, C_HIDDEN, C_OUT)

    out = graph_level_gnn_forward(x, edge_index, batch_idx, params, num_graphs=G)
    out = jax.block_until_ready(out)
    assert out.shape == (G,), out.shape

    # Pure-JAX f32 reference (un-folded module math) for a sanity check.
    def ref_forward():
        src, dst = edge_index[0], edge_index[1]
        adj = jnp.zeros((N, N), jnp.float32).at[dst, src].add(1.0) + jnp.eye(N)
        dinv = 1.0 / jnp.sqrt(adj.sum(axis=1))
        a_norm = dinv[:, None] * adj * dinv[None, :]
        w1, b1, w2, b2, wh, bh = params
        h = jnp.maximum(a_norm @ (x @ w1) + b1, 0.0)
        h = a_norm @ (h @ w2) + b2
        onehot = (batch_idx[None, :] == jnp.arange(G)[:, None]).astype(jnp.float32)
        pooled = (onehot / onehot.sum(axis=1, keepdims=True)) @ h
        return (pooled @ wh + bh)[:, 0]

    ref = ref_forward()
    # bf16 MXU inputs with f32 accumulation => loose-but-tight-enough tolerance.
    assert jnp.allclose(out, ref, atol=5e-2, rtol=5e-2), (out, ref)

    print("KERNEL_OK")
</pallas_src>

<mosaic_0001>
module attributes {stable_mosaic.version = 11 : i64} {
  func.func @gnn_kernel(%arg0: i32, %arg1: i32, %arg2: memref<128x128xbf16, #tpu.memory_space<vmem>>, %arg3: memref<8x128xbf16, #tpu.memory_space<vmem>>, %arg4: memref<128x128xbf16, #tpu.memory_space<vmem>>, %arg5: memref<1x128xf32, #tpu.memory_space<vmem>>, %arg6: memref<128x128xbf16, #tpu.memory_space<vmem>>, %arg7: memref<1x128xf32, #tpu.memory_space<vmem>>, %arg8: memref<8x128xf32, #tpu.memory_space<vmem>>, %arg9: memref<128x128xf32, #tpu.memory_space<vmem>>, %arg10: memref<8x128xf32, #tpu.memory_space<vmem>>) attributes {dimension_semantics = [#tpu.dimension_semantics<arbitrary>, #tpu.dimension_semantics<arbitrary>], iteration_bounds = array<i64: 1, 1>, scalar_prefetch = 0 : i64, scratch_operands = 2 : i64, tpu.core_type = #tpu.core_type<tc>, window_params = [{transform_indices = @transform_0, window_bounds = array<i64: 128, 128>}, {transform_indices = @transform_1, window_bounds = array<i64: 8, 128>}, {transform_indices = @transform_2, window_bounds = array<i64: 128, 128>}, {pipeline_mode = #tpu.pipeline_mode<synchronous>, transform_indices = @transform_3, window_bounds = array<i64: 1, 128>}, {pipeline_mode = #tpu.pipeline_mode<synchronous>, transform_indices = @transform_4, window_bounds = array<i64: 128, 128>}, {pipeline_mode = #tpu.pipeline_mode<synchronous>, transform_indices = @transform_5, window_bounds = array<i64: 1, 128>}, {pipeline_mode = #tpu.pipeline_mode<synchronous>, transform_indices = @transform_6, window_bounds = array<i64: 8, 128>}]} {
    %c0_i32 = arith.constant 0 : i32
    %0 = arith.cmpi eq, %arg0, %c0_i32 : i32
    %c0_i32_0 = arith.constant 0 : i32
    %1 = arith.cmpi eq, %arg1, %c0_i32_0 : i32
    %2 = arith.andi %0, %1 : i1
    %3 = arith.extui %2 : i1 to i32
    %c0_i32_1 = arith.constant 0 : i32
    %4 = arith.cmpi ne, %3, %c0_i32_1 : i32
    scf.if %4 {
      %cst_16 = arith.constant 0.000000e+00 : f32
      %22 = vector.broadcast %cst_16 : f32 to vector<8x128xf32>
      %c0_17 = arith.constant 0 : index
      %c0_18 = arith.constant 0 : index
      %23 = vector.load %arg10[%c0_17, %c0_18] : memref<8x128xf32, #tpu.memory_space<vmem>>, vector<8x128xf32>
      tpu.vector_store %arg10[%c0_17, %c0_18], %22 {strides = array<i32>} : memref<8x128xf32, #tpu.memory_space<vmem>>, vector<8x128xf32>,
    } else {
    }
    %c0_i32_2 = arith.constant 0 : i32
    %5 = arith.cmpi eq, %arg1, %c0_i32_2 : i32
    %6 = arith.extui %5 : i1 to i32
    %c0_i32_3 = arith.constant 0 : i32
    %7 = arith.cmpi ne, %6, %c0_i32_3 : i32
    scf.if %7 {
      %cst_16 = arith.constant 0.000000e+00 : f32
      %22 = vector.broadcast %cst_16 : f32 to vector<128x128xf32>
      %c0_17 = arith.constant 0 : index
      %c0_18 = arith.constant 0 : index
      %23 = vector.load %arg9[%c0_17, %c0_18] : memref<128x128xf32, #tpu.memory_space<vmem>>, vector<128x128xf32>
      tpu.vector_store %arg9[%c0_17, %c0_18], %22 {strides = array<i32>} : memref<128x128xf32, #tpu.memory_space<vmem>>, vector<128x128xf32>,
    } else {
    }
    %c0 = arith.constant 0 : index
    %c0_4 = arith.constant 0 : index
    %8 = vector.load %arg9[%c0, %c0_4] : memref<128x128xf32, #tpu.memory_space<vmem>>, vector<128x128xf32>
    %c0_5 = arith.constant 0 : index
    %c0_6 = arith.constant 0 : index
    %9 = vector.load %arg2[%c0_5, %c0_6] : memref<128x128xbf16, #tpu.memory_space<vmem>>, vector<128x128xbf16>
    %c0_7 = arith.constant 0 : index
    %c0_8 = arith.constant 0 : index
    %10 = vector.load %arg4[%c0_7, %c0_8] : memref<128x128xbf16, #tpu.memory_space<vmem>>, vector<128x128xbf16>
    %cst = arith.constant dense<0.000000e+00> : vector<128x128xf32>
    %11 = tpu.matmul %9, %10, %cst {dimension_numbers = #tpu.dot_dimension_numbers<[1], [0], [0], [1], [0, 0, 1, 1], [], []>} : vector<128x128xbf16>, vector<128x128xbf16>, vector<128x128xf32> -> vector<128x128xf32>
    %12 = arith.addf %8, %11 : vector<128x128xf32>
    %c0_9 = arith.constant 0 : index
    %c0_10 = arith.constant 0 : index
    %13 = vector.load %arg9[%c0_9, %c0_10] : memref<128x128xf32, #tpu.memory_space<vmem>>, vector<128x128xf32>
    tpu.vector_store %arg9[%c0_9, %c0_10], %12 {strides = array<i32>} : memref<128x128xf32, #tpu.memory_space<vmem>>, vector<128x128xf32>,
    %c0_i32_11 = arith.constant 0 : i32
    %14 = arith.cmpi eq, %arg1, %c0_i32_11 : i32
    %15 = arith.extui %14 : i1 to i32
    %c0_i32_12 = arith.constant 0 : i32
    %16 = arith.cmpi ne, %15, %c0_i32_12 : i32
    scf.if %16 {
      %c0_16 = arith.constant 0 : index
      %c0_17 = arith.constant 0 : index
      %22 = vector.load %arg9[%c0_16, %c0_17] : memref<128x128xf32, #tpu.memory_space<vmem>>, vector<128x128xf32>
      %c0_18 = arith.constant 0 : index
      %c0_19 = arith.constant 0 : index
      %23 = vector.load %arg5[%c0_18, %c0_19] : memref<1x128xf32, #tpu.memory_space<vmem>>, vector<1x128xf32>
      %24 = vector.broadcast %23 : vector<1x128xf32> to vector<128x128xf32>
      %25 = arith.addf %22, %24 : vector<128x128xf32>
      %cst_20 = arith.constant 0.000000e+00 : f32
      %26 = vector.broadcast %cst_20 : f32 to vector<128x128xf32>
      %27 = arith.maximumf %25, %26 : vector<128x128xf32>
      %c0_21 = arith.constant 0 : index
      %c0_22 = arith.constant 0 : index
      %28 = vector.load %arg10[%c0_21, %c0_22] : memref<8x128xf32, #tpu.memory_space<vmem>>, vector<8x128xf32>
      %c0_23 = arith.constant 0 : index
      %c0_24 = arith.constant 0 : index
      %29 = vector.load %arg3[%c0_23, %c0_24] : memref<8x128xbf16, #tpu.memory_space<vmem>>, vector<8x128xbf16>
      %30 = arith.truncf %27 : vector<128x128xf32> to vector<128x128xbf16>
      %cst_25 = arith.constant dense<0.000000e+00> : vector<8x128xf32>
      %31 = tpu.matmul %29, %30, %cst_25 {dimension_numbers = #tpu.dot_dimension_numbers<[1], [0], [0], [1], [0, 0, 1, 1], [], []>} : vector<8x128xbf16>, vector<128x128xbf16>, vector<8x128xf32> -> vector<8x128xf32>
      %32 = arith.addf %28, %31 : vector<8x128xf32>
      %c0_26 = arith.constant 0 : index
      %c0_27 = arith.constant 0 : index
      %33 = vector.load %arg10[%c0_26, %c0_27] : memref<8x128xf32, #tpu.memory_space<vmem>>, vector<8x128xf32>
      tpu.vector_store %arg10[%c0_26, %c0_27], %32 {strides = array<i32>} : memref<8x128xf32, #tpu.memory_space<vmem>>, vector<8x128xf32>,
    } else {
    }
    %c0_i32_13 = arith.constant 0 : i32
    %17 = arith.cmpi eq, %arg0, %c0_i32_13 : i32
    %c0_i32_14 = arith.constant 0 : i32
    %18 = arith.cmpi eq, %arg1, %c0_i32_14 : i32
    %19 = arith.andi %17, %18 : i1
    %20 = arith.extui %19 : i1 to i32
    %c0_i32_15 = arith.constant 0 : i32
    %21 = arith.cmpi ne, %20, %c0_i32_15 : i32
    scf.if %21 {
      %c0_16 = arith.constant 0 : index
      %c0_17 = arith.constant 0 : index
      %22 = vector.load %arg10[%c0_16, %c0_17] : memref<8x128xf32, #tpu.memory_space<vmem>>, vector<8x128xf32>
      %23 = arith.truncf %22 : vector<8x128xf32> to vector<8x128xbf16>
      %c0_18 = arith.constant 0 : index
      %c0_19 = arith.constant 0 : index
      %24 = vector.load %arg6[%c0_18, %c0_19] : memref<128x128xbf16, #tpu.memory_space<vmem>>, vector<128x128xbf16>
      %cst_20 = arith.constant dense<0.000000e+00> : vector<8x128xf32>
      %25 = tpu.matmul %23, %24, %cst_20 {dimension_numbers = #tpu.dot_dimension_numbers<[1], [0], [0], [1], [0, 0, 1, 1], [], []>} : vector<8x128xbf16>, vector<128x128xbf16>, vector<8x128xf32> -> vector<8x128xf32>
      %c0_21 = arith.constant 0 : index
      %c0_22 = arith.constant 0 : index
      %26 = vector.load %arg7[%c0_21, %c0_22] : memref<1x128xf32, #tpu.memory_space<vmem>>, vector<1x128xf32>
      %27 = vector.broadcast %26 : vector<1x128xf32> to vector<8x128xf32>
      %28 = arith.addf %25, %27 : vector<8x128xf32>
      %c0_23 = arith.constant 0 : index
      %c0_24 = arith.constant 0 : index
      %29 = vector.load %arg8[%c0_23, %c0_24] : memref<8x128xf32, #tpu.memory_space<vmem>>, vector<8x128xf32>
      tpu.vector_store %arg8[%c0_23, %c0_24], %28 {strides = array<i32>} : memref<8x128xf32, #tpu.memory_space<vmem>>, vector<8x128xf32>,
    } else {
    }
    return
  }
  func.func @transform_0(%arg0: i32, %arg1: i32) -> (i32, i32) {
    %c0_i32 = arith.constant 0 : i32
    return %arg0, %arg1 : i32, i32
  }
  func.func @transform_1(%arg0: i32, %arg1: i32) -> (i32, i32) {
    %c0_i32 = arith.constant 0 : i32
    %c0_i32_0 = arith.constant 0 : i32
    return %c0_i32, %arg0 : i32, i32
  }
  func.func @transform_2(%arg0: i32, %arg1: i32) -> (i32, i32) {
    %c0_i32 = arith.constant 0 : i32
    %c0_i32_0 = arith.constant 0 : i32
    return %arg1, %c0_i32 : i32, i32
  }
  func.func @transform_3(%arg0: i32, %arg1: i32) -> (i32, i32) {
    %c0_i32 = arith.constant 0 : i32
    %c0_i32_0 = arith.constant 0 : i32
    %c0_i32_1 = arith.constant 0 : i32
    return %c0_i32, %c0_i32_0 : i32, i32
  }
  func.func @transform_4(%arg0: i32, %arg1: i32) -> (i32, i32) {
    %c0_i32 = arith.constant 0 : i32
    %c0_i32_0 = arith.constant 0 : i32
    %c0_i32_1 = arith.constant 0 : i32
    return %c0_i32, %c0_i32_0 : i32, i32
  }
  func.func @transform_5(%arg0: i32, %arg1: i32) -> (i32, i32) {
    %c0_i32 = arith.constant 0 : i32
    %c0_i32_0 = arith.constant 0 : i32
    %c0_i32_1 = arith.constant 0 : i32
    return %c0_i32, %c0_i32_0 : i32, i32
  }
  func.func @transform_6(%arg0: i32, %arg1: i32) -> (i32, i32) {
    %c0_i32 = arith.constant 0 : i32
    %c0_i32_0 = arith.constant 0 : i32
    %c0_i32_1 = arith.constant 0 : i32
    return %c0_i32, %c0_i32_0 : i32, i32
  }
}

</mosaic_0001>

<llo_original>
// kernel: tpu_custom_call.1
$region0: #{tpu_custom_call.1}
  #allocation0 [shape = 'u32[]', space=smem, size = 0x4, offset = 0x4, fixed_abs, tag = 'smem constant byte address 0x4 - core index']
  #allocation1 [shape = 'u32[72,128]{1,0:T(1,128)}', space=vmem, size = 0x9000, scoped, tag = 'internal scratch']
  #allocation2 [shape = 'f32[128,128]{1,0:T(8,128)}', space=vmem, size = 0x10000, scoped, tag = 'scratch operand']
  #allocation3 [shape = 'f32[8,128]{1,0:T(8,128)}', space=vmem, size = 0x1000, scoped, tag = 'scratch operand']
  %s0 = inlined_call_operand.hbm [shape: bf16[128,128], index: 0, kind: input, shape index: {}]
  %s1 = inlined_call_operand.hbm [shape: bf16[8,128], index: 1, kind: input, shape index: {}]
  %s2 = inlined_call_operand.hbm [shape: bf16[128,128], index: 2, kind: input, shape index: {}]
  %s3 = inlined_call_operand.vmem [shape: f32[1,128], index: 3, kind: input, shape index: {}]
  %s4 = inlined_call_operand.hbm [shape: bf16[128,128], index: 4, kind: input, shape index: {}]
  %s5 = inlined_call_operand.vmem [shape: f32[1,128], index: 5, kind: input, shape index: {}]
  %s6 = inlined_call_operand.hbm [shape: f32[8,128], index: 6, kind: output, shape index: {}]
  %s7 = sld [smem:[#allocation0]]
  $region66: #{tpu_custom_call.1} parent=0
    _
  %s9 = ssub.s32 1, %s7
  %s10 = scalar_select 0, %s9, %s7
  $region1: #{tpu_custom_call.1} parent=0
    #allocation4 [shape = 'u8[32768]{0}', space=vmem, size = 0x8000, scoped, tag = 'input window, operand 0, single buffered']
    #allocation5 [shape = 's32[1]{0}', space=sflag, size = 0x4, scoped, tag = 'scoped memory for tpu_custom_call.1']
    #allocation6 [shape = 's32[1]{0}', space=sflag, size = 0x4, scoped, tag = 'scoped memory for tpu_custom_call.1']
    #allocation7 [shape = 'u8[2048]{0}', space=vmem, size = 0x800, scoped, tag = 'input window, operand 1, single buffered']
    #allocation8 [shape = 's32[1]{0}', space=sflag, size = 0x4, scoped, tag = 'scoped memory for tpu_custom_call.1']
    #allocation9 [shape = 'u8[32768]{0}', space=vmem, size = 0x8000, scoped, tag = 'input window, operand 2, single buffered']
    #allocation10 [shape = 'u8[32768]{0}', space=vmem, size = 0x8000, scoped, tag = 'input window, operand 4, single buffered']
    #allocation11 [shape = 's32[1]{0}', space=sflag, size = 0x4, scoped, tag = 'scoped memory for tpu_custom_call.1']
    #allocation12 [shape = 'u8[4096]{0}', space=vmem, size = 0x1000, scoped, tag = 'output window, operand 0, single buffered']
    %11 = vsyncpa [#allocation5], 0
    %12 = vsyncpa [#allocation8], 0
    %13 = vsyncpa [#allocation11], 0
    %14 = vsyncpa [#allocation6], 0
    // Predicated region
    $region2: #{tpu_custom_call.1} parent=1 // pred_check
      _
    $region3: #{tpu_custom_call.1} parent=1 // pred_check_branch
      %16 = sbr.rel (0) target = $region5
    $region4: #{tpu_custom_call.1} parent=1 // pred_region
      %18 = vsyncadd [#allocation5], 0
      %s19 = sshll.u32 %s0, 4
      %s20 = int_to_ptr.hbm [resolvable:$true] %s19
      %s21 = sshll.u32 [#allocation4], 4
      %s22 = int_to_ptr.vmem [resolvable:$true] %s21
      %27 = dma.hbm_to_vmem [thread:$0]  %s20, 1024, %s22, [#allocation5], 64, 64, 4
    $region5: #{tpu_custom_call.1} parent=1 // pred_fallthru
      _
    // Predicated region
    $region6: #{tpu_custom_call.1} parent=1 // pred_check
      _
    $region7: #{tpu_custom_call.1} parent=1 // pred_check_branch
      %29 = sbr.rel (0) target = $region9
    $region8: #{tpu_custom_call.1} parent=1 // pred_region
      %31 = vsyncadd [#allocation8], 0
      %s33 = sshll.u32 %s1, 4
      %s34 = int_to_ptr.hbm [resolvable:$true] %s33
      %s35 = sshll.u32 [#allocation7], 4
      %s36 = int_to_ptr.vmem [resolvable:$true] %s35
      %38 = dma.hbm_to_vmem [thread:$0]  %s34, 64, %s36, [#allocation8]
    $region9: #{tpu_custom_call.1} parent=1 // pred_fallthru
      _
    // Predicated region
    $region10: #{tpu_custom_call.1} parent=1 // pred_check
      _
    $region11: #{tpu_custom_call.1} parent=1 // pred_check_branch
      %40 = sbr.rel (0) target = $region13
    $region12: #{tpu_custom_call.1} parent=1 // pred_region
      %42 = vsyncadd [#allocation8], 0
      %s43 = sshll.u32 %s2, 4
      %s44 = int_to_ptr.hbm [resolvable:$true] %s43
      %s45 = sshll.u32 [#allocation9], 4
      %s46 = int_to_ptr.vmem [resolvable:$true] %s45
      %51 = dma.hbm_to_vmem [thread:$0]  %s44, 1024, %s46, [#allocation8], 64, 64, 4
    $region13: #{tpu_custom_call.1} parent=1 // pred_fallthru
      _
    // Predicated region
    $region14: #{tpu_custom_call.1} parent=1 // pred_check
      _
    $region15: #{tpu_custom_call.1} parent=1 // pred_check_branch
      %53 = sbr.rel (0) target = $region17
    $region16: #{tpu_custom_call.1} parent=1 // pred_region
      _
    $region17: #{tpu_custom_call.1} parent=1 // pred_fallthru
      _
    // Predicated region
    $region18: #{tpu_custom_call.1} parent=1 // pred_check
      _
    $region19: #{tpu_custom_call.1} parent=1 // pred_check_branch
      %55 = sbr.rel (0) target = $region21
    $region20: #{tpu_custom_call.1} parent=1 // pred_region
      %57 = vsyncadd [#allocation11], 0
      %s58 = sshll.u32 %s4, 4
      %s59 = int_to_ptr.hbm [resolvable:$true] %s58
      %s60 = sshll.u32 [#allocation10], 4
      %s61 = int_to_ptr.vmem [resolvable:$true] %s60
      %66 = dma.hbm_to_vmem [thread:$0]  %s59, 1024, %s61, [#allocation11], 64, 64, 4
    $region21: #{tpu_custom_call.1} parent=1 // pred_fallthru
      _
    // Predicated region
    $region22: #{tpu_custom_call.1} parent=1 // pred_check
      _
    $region23: #{tpu_custom_call.1} parent=1 // pred_check_branch
      %68 = sbr.rel (0) target = $region25
    $region24: #{tpu_custom_call.1} parent=1 // pred_region
      _
    $region25: #{tpu_custom_call.1} parent=1 // pred_fallthru
      _
    // Predicated region
    $region26: #{tpu_custom_call.1} parent=1 // pred_check
      _
    $region27: #{tpu_custom_call.1} parent=1 // pred_check_branch
      %70 = sbr.rel (0) target = $region29
    $region28: #{tpu_custom_call.1} parent=1 // pred_region
      %72 = dma.done [#allocation5], 1024
    $region29: #{tpu_custom_call.1} parent=1 // pred_fallthru
      _
    // Predicated region
    $region30: #{tpu_custom_call.1} parent=1 // pred_check
      _
    $region31: #{tpu_custom_call.1} parent=1 // pred_check_branch
      %74 = sbr.rel (0) target = $region33
    $region32: #{tpu_custom_call.1} parent=1 // pred_region
      %76 = dma.done [#allocation8], 64
    $region33: #{tpu_custom_call.1} parent=1 // pred_fallthru
      _
    // Predicated region
    $region34: #{tpu_custom_call.1} parent=1 // pred_check
      _
    $region35: #{tpu_custom_call.1} parent=1 // pred_check_branch
      %78 = sbr.rel (0) target = $region37
    $region36: #{tpu_custom_call.1} parent=1 // pred_region
      %80 = dma.done [#allocation8], 1024
    $region37: #{tpu_custom_call.1} parent=1 // pred_fallthru
      _
    // Predicated region
    $region38: #{tpu_custom_call.1} parent=1 // pred_check
      _
    $region39: #{tpu_custom_call.1} parent=1 // pred_check_branch
      %82 = sbr.rel (0) target = $region41
    $region40: #{tpu_custom_call.1} parent=1 // pred_region
      %84 = dma.done [#allocation11], 1024
    $region41: #{tpu_custom_call.1} parent=1 // pred_fallthru
      _
    %p85 = scmp.eq.s32.totalorder 0, 0
    %p86 = scmp.eq.s32.totalorder 0, 0
    %p87 = pnand %p85, %p86
    %p88 = pneg %p87
    // Predicated region
    $region42: #{tpu_custom_call.1} parent=1 // pred_check
      _
    $region43: #{tpu_custom_call.1} parent=1 // pred_check_branch
      %90 = sbr.rel (%p87) target = $region45
    $region44: #{tpu_custom_call.1} parent=1 // pred_region
      %91 = vst [vmem:[#allocation3] sm:$0xff] 0.0
    $region45: #{tpu_custom_call.1} parent=1 // pred_fallthru
      _
    // Predicated region
    $region46: #{tpu_custom_call.1} parent=1 // pred_check
      %p92 = pneg %p86
    $region47: #{tpu_custom_call.1} parent=1 // pred_check_branch
      %94 = sbr.rel (%p92) target = $region49
    $region48: #{tpu_custom_call.1} parent=1 // pred_region
      %95 = vst [vmem:[#allocation2] sm:$0xff] 0.0
      %96 = vst [vmem:[#allocation2 + $0x8] sm:$0xff] 0.0
      %97 = vst [vmem:[#allocation2 + $0x10] sm:$0xff] 0.0
      %98 = vst [vmem:[#allocation2 + $0x18] sm:$0xff] 0.0
      %99 = vst [vmem:[#allocation2 + $0x20] sm:$0xff] 0.0
      %100 = vst [vmem:[#allocation2 + $0x28] sm:$0xff] 0.0
      %101 = vst [vmem:[#allocation2 + $0x30] sm:$0xff] 0.0
      %102 = vst [vmem:[#allocation2 + $0x38] sm:$0xff] 0.0
      %103 = vst [vmem:[#allocation2 + $0x40] sm:$0xff] 0.0
      %104 = vst [vmem:[#allocation2 + $0x48] sm:$0xff] 0.0
      %105 = vst [vmem:[#allocation2 + $0x50] sm:$0xff] 0.0
      %106 = vst [vmem:[#allocation2 + $0x58] sm:$0xff] 0.0
      %107 = vst [vmem:[#allocation2 + $0x60] sm:$0xff] 0.0
      %108 = vst [vmem:[#allocation2 + $0x68] sm:$0xff] 0.0
      %109 = vst [vmem:[#allocation2 + $0x70] sm:$0xff] 0.0
      %110 = vst [vmem:[#allocation2 + $0x78] sm:$0xff] 0.0
    $region49: #{tpu_custom_call.1} parent=1 // pred_fallthru
      _
    %v111 = vld [vmem:[#allocation2] sm:$0xff]
    %v112 = vld [vmem:[#allocation2 + $0x8] sm:$0xff]
    %v113 = vld [vmem:[#allocation2 + $0x10] sm:$0xff]
    %v114 = vld [vmem:[#allocation2 + $0x18] sm:$0xff]
    %v115 = vld [vmem:[#allocation2 + $0x20] sm:$0xff]
    %v116 = vld [vmem:[#allocation2 + $0x28] sm:$0xff]
    %v117 = vld [vmem:[#allocation2 + $0x30] sm:$0xff]
    %v118 = vld [vmem:[#allocation2 + $0x38] sm:$0xff]
    %v119 = vld [vmem:[#allocation2 + $0x40] sm:$0xff]
    %v120 = vld [vmem:[#allocation2 + $0x48] sm:$0xff]
    %v121 = vld [vmem:[#allocation2 + $0x50] sm:$0xff]
    %v122 = vld [vmem:[#allocation2 + $0x58] sm:$0xff]
    %v123 = vld [vmem:[#allocation2 + $0x60] sm:$0xff]
    %v124 = vld [vmem:[#allocation2 + $0x68] sm:$0xff]
    %v125 = vld [vmem:[#allocation2 + $0x70] sm:$0xff]
    %v126 = vld [vmem:[#allocation2 + $0x78] sm:$0xff]
    %v127 = vld [vmem:[#allocation4] sm:$0xf]
    %v128 = vld [vmem:[#allocation4 + $0x4] sm:$0xf]
    %v129 = vld [vmem:[#allocation4 + $0x8] sm:$0xf]
    %v130 = vld [vmem:[#allocation4 + $0xc] sm:$0xf]
    %v131 = vld [vmem:[#allocation4 + $0x10] sm:$0xf]
    %v132 = vld [vmem:[#allocation4 + $0x14] sm:$0xf]
    %v133 = vld [vmem:[#allocation4 + $0x18] sm:$0xf]
    %v134 = vld [vmem:[#allocation4 + $0x1c] sm:$0xf]
    %v135 = vld [vmem:[#allocation4 + $0x20] sm:$0xf]
    %v136 = vld [vmem:[#allocation4 + $0x24] sm:$0xf]
    %v137 = vld [vmem:[#allocation4 + $0x28] sm:$0xf]
    %v138 = vld [vmem:[#allocation4 + $0x2c] sm:$0xf]
    %v139 = vld [vmem:[#allocation4 + $0x30] sm:$0xf]
    %v140 = vld [vmem:[#allocation4 + $0x34] sm:$0xf]
    %v141 = vld [vmem:[#allocation4 + $0x38] sm:$0xf]
    %v142 = vld [vmem:[#allocation4 + $0x3c] sm:$0xf]
    %v143 = vld [vmem:[#allocation9] sm:$0xf]
    %v144 = vld [vmem:[#allocation9 + $0x4] sm:$0xf]
    %v145 = vld [vmem:[#allocation9 + $0x8] sm:$0xf]
    %v146 = vld [vmem:[#allocation9 + $0xc] sm:$0xf]
    %v147 = vld [vmem:[#allocation9 + $0x10] sm:$0xf]
    %v148 = vld [vmem:[#allocation9 + $0x14] sm:$0xf]
    %v149 = vld [vmem:[#allocation9 + $0x18] sm:$0xf]
    %v150 = vld [vmem:[#allocation9 + $0x1c] sm:$0xf]
    %v151 = vld [vmem:[#allocation9 + $0x20] sm:$0xf]
    %v152 = vld [vmem:[#allocation9 + $0x24] sm:$0xf]
    %v153 = vld [vmem:[#allocation9 + $0x28] sm:$0xf]
    %v154 = vld [vmem:[#allocation9 + $0x2c] sm:$0xf]
    %v155 = vld [vmem:[#allocation9 + $0x30] sm:$0xf]
    %v156 = vld [vmem:[#allocation9 + $0x34] sm:$0xf]
    %v157 = vld [vmem:[#allocation9 + $0x38] sm:$0xf]
    %v158 = vld [vmem:[#allocation9 + $0x3c] sm:$0xf]
    %v175 = vunpack.c.l.b16 %v127
    %v176 = vunpack.c.l.b16 %v128
    %v177 = vunpack.c.l.b16 %v129
    %v178 = vunpack.c.l.b16 %v130
    %v179 = vunpack.c.l.b16 %v131
    %v180 = vunpack.c.l.b16 %v132
    %v181 = vunpack.c.l.b16 %v133
    %v182 = vunpack.c.l.b16 %v134
    %v183 = vunpack.c.l.b16 %v135
    %v184 = vunpack.c.l.b16 %v136
    %v185 = vunpack.c.l.b16 %v137
    %v186 = vunpack.c.l.b16 %v138
    %v187 = vunpack.c.l.b16 %v139
    %v188 = vunpack.c.l.b16 %v140
    %v189 = vunpack.c.l.b16 %v141
    %v190 = vunpack.c.l.b16 %v142
    %v191 = vpack.c.b16 %v176, %v175
    %v192 = vpack.c.b16 %v178, %v177
    %v193 = vpack.c.b16 %v180, %v179
    %v194 = vpack.c.b16 %v182, %v181
    %v195 = vpack.c.b16 %v184, %v183
    %v196 = vpack.c.b16 %v186, %v185
    %v197 = vpack.c.b16 %v188, %v187
    %v198 = vpack.c.b16 %v190, %v189
    %v223 = vunpack.c.l.b16 %v143
    %v224 = vunpack.c.l.b16 %v144
    %v225 = vunpack.c.l.b16 %v145
    %v226 = vunpack.c.l.b16 %v146
    %v227 = vunpack.c.l.b16 %v147
    %v228 = vunpack.c.l.b16 %v148
    %v229 = vunpack.c.l.b16 %v149
    %v230 = vunpack.c.l.b16 %v150
    %v231 = vunpack.c.l.b16 %v151
    %v232 = vunpack.c.l.b16 %v152
    %v233 = vunpack.c.l.b16 %v153
    %v234 = vunpack.c.l.b16 %v154
    %v235 = vunpack.c.l.b16 %v155
    %v236 = vunpack.c.l.b16 %v156
    %v237 = vunpack.c.l.b16 %v157
    %v238 = vunpack.c.l.b16 %v158
    %v239 = vpack.c.b16 %v224, %v223
    %v240 = vpack.c.b16 %v226, %v225
    %v241 = vpack.c.b16 %v228, %v227
    %v242 = vpack.c.b16 %v230, %v229
    %v243 = vpack.c.b16 %v232, %v231
    %v244 = vpack.c.b16 %v234, %v233
    %v245 = vpack.c.b16 %v236, %v235
    %v246 = vpack.c.b16 %v238, %v237
    %255 = vmatpush.bf16.msra.mxu0 %v246
    %256 = vmatpush.bf16.msra.mxu0 %v245
    %257 = vmatpush.bf16.msra.mxu0 %v244
    %258 = vmatpush.bf16.msra.mxu0 %v243
    %259 = vmatpush.bf16.msra.mxu0 %v242
    %260 = vmatpush.bf16.msra.mxu0 %v241
    %261 = vmatpush.bf16.msra.mxu0 %v240
    %262 = vmatpush.bf16.msra.mxu0 %v239
    %263 = vmatmul.bf16.gmra.mxu0 %v191
    %v264 = vpop.f32.mrf.mxu0
    %v265 = vadd.f32 0.0, %v264
    %v266 = vpop.f32.mrf.mxu0
    %v267 = vadd.f32 0.0, %v266
    %268 = vmatmul.bf16.gmra.mxu0 %v192
    %v269 = vpop.f32.mrf.mxu0
    %v270 = vadd.f32 0.0, %v269
    %v271 = vpop.f32.mrf.mxu0
    %v272 = vadd.f32 0.0, %v271
    %273 = vmatmul.bf16.gmra.mxu0 %v193
    %v274 = vpop.f32.mrf.mxu0
    %v275 = vadd.f32 0.0, %v274
    %v276 = vpop.f32.mrf.mxu0
    %v277 = vadd.f32 0.0, %v276
    %278 = vmatmul.bf16.gmra.mxu0 %v194
    %v279 = vpop.f32.mrf.mxu0
    %v280 = vadd.f32 0.0, %v279
    %v281 = vpop.f32.mrf.mxu0
    %v282 = vadd.f32 0.0, %v281
    %283 = vmatmul.bf16.gmra.mxu0 %v195
    %v284 = vpop.f32.mrf.mxu0
    %v285 = vadd.f32 0.0, %v284
    %v286 = vpop.f32.mrf.mxu0
    %v287 = vadd.f32 0.0, %v286
    %288 = vmatmul.bf16.gmra.mxu0 %v196
    %v289 = vpop.f32.mrf.mxu0
    %v290 = vadd.f32 0.0, %v289
    %v291 = vpop.f32.mrf.mxu0
    %v292 = vadd.f32 0.0, %v291
    %293 = vmatmul.bf16.gmra.mxu0 %v197
    %v294 = vpop.f32.mrf.mxu0
    %v295 = vadd.f32 0.0, %v294
    %v296 = vpop.f32.mrf.mxu0
    %v297 = vadd.f32 0.0, %v296
    %298 = vmatmul.bf16.gmra.mxu0 %v198
    %v299 = vpop.f32.mrf.mxu0
    %v300 = vadd.f32 0.0, %v299
    %v301 = vpop.f32.mrf.mxu0
    %v302 = vadd.f32 0.0, %v301
    %303 = vdwg.mxu0
    %v304 = vadd.f32 %v111, %v265
    %v305 = vadd.f32 %v112, %v267
    %v306 = vadd.f32 %v113, %v270
    %v307 = vadd.f32 %v114, %v272
    %v308 = vadd.f32 %v115, %v275
    %v309 = vadd.f32 %v116, %v277
    %v310 = vadd.f32 %v117, %v280
    %v311 = vadd.f32 %v118, %v282
    %v312 = vadd.f32 %v119, %v285
    %v313 = vadd.f32 %v120, %v287
    %v314 = vadd.f32 %v121, %v290
    %v315 = vadd.f32 %v122, %v292
    %v316 = vadd.f32 %v123, %v295
    %v317 = vadd.f32 %v124, %v297
    %v318 = vadd.f32 %v125, %v300
    %v319 = vadd.f32 %v126, %v302
    %320 = vst [vmem:[#allocation2] sm:$0xff] %v304
    %321 = vst [vmem:[#allocation2 + $0x8] sm:$0xff] %v305
    %322 = vst [vmem:[#allocation2 + $0x10] sm:$0xff] %v306
    %323 = vst [vmem:[#allocation2 + $0x18] sm:$0xff] %v307
    %324 = vst [vmem:[#allocation2 + $0x20] sm:$0xff] %v308
    %325 = vst [vmem:[#allocation2 + $0x28] sm:$0xff] %v309
    %326 = vst [vmem:[#allocation2 + $0x30] sm:$0xff] %v310
    %327 = vst [vmem:[#allocation2 + $0x38] sm:$0xff] %v311
    %328 = vst [vmem:[#allocation2 + $0x40] sm:$0xff] %v312
    %329 = vst [vmem:[#allocation2 + $0x48] sm:$0xff] %v313
    %330 = vst [vmem:[#allocation2 + $0x50] sm:$0xff] %v314
    %331 = vst [vmem:[#allocation2 + $0x58] sm:$0xff] %v315
    %332 = vst [vmem:[#allocation2 + $0x60] sm:$0xff] %v316
    %333 = vst [vmem:[#allocation2 + $0x68] sm:$0xff] %v317
    %334 = vst [vmem:[#allocation2 + $0x70] sm:$0xff] %v318
    %335 = vst [vmem:[#allocation2 + $0x78] sm:$0xff] %v319
    // Predicated region
    $region50: #{tpu_custom_call.1} parent=1 // pred_check
      %p336 = pneg %p86
    $region51: #{tpu_custom_call.1} parent=1 // pred_check_branch
      %338 = sbr.rel (%p336) target = $region53
    $region52: #{tpu_custom_call.1} parent=1 // pred_region
      %v339 = vld [vmem:[#allocation2] sm:$0xff]
      %v340 = vld [vmem:[#allocation2 + $0x8] sm:$0xff]
      %v341 = vld [vmem:[#allocation2 + $0x10] sm:$0xff]
      %v342 = vld [vmem:[#allocation2 + $0x18] sm:$0xff]
      %v343 = vld [vmem:[#allocation2 + $0x20] sm:$0xff]
      %v344 = vld [vmem:[#allocation2 + $0x28] sm:$0xff]
      %v345 = vld [vmem:[#allocation2 + $0x30] sm:$0xff]
      %v346 = vld [vmem:[#allocation2 + $0x38] sm:$0xff]
      %v347 = vld [vmem:[#allocation2 + $0x40] sm:$0xff]
      %v348 = vld [vmem:[#allocation2 + $0x48] sm:$0xff]
      %v349 = vld [vmem:[#allocation2 + $0x50] sm:$0xff]
      %v350 = vld [vmem:[#allocation2 + $0x58] sm:$0xff]
      %v351 = vld [vmem:[#allocation2 + $0x60] sm:$0xff]
      %v352 = vld [vmem:[#allocation2 + $0x68] sm:$0xff]
      %v353 = vld [vmem:[#allocation2 + $0x70] sm:$0xff]
      %v354 = vld [vmem:[#allocation2 + $0x78] sm:$0xff]
      %v355 = vld [vmem:[%s3] sm:$0x1]
      %v357 = vperm.slane %v355, 0
      %v359 = vadd.f32 %v339, %v357
      %v360 = vadd.f32 %v340, %v357
      %v361 = vadd.f32 %v341, %v357
      %v362 = vadd.f32 %v342, %v357
      %v363 = vadd.f32 %v343, %v357
      %v364 = vadd.f32 %v344, %v357
      %v365 = vadd.f32 %v345, %v357
      %v366 = vadd.f32 %v346, %v357
      %v367 = vadd.f32 %v347, %v357
      %v368 = vadd.f32 %v348, %v357
      %v369 = vadd.f32 %v349, %v357
      %v370 = vadd.f32 %v350, %v357
      %v371 = vadd.f32 %v351, %v357
      %v372 = vadd.f32 %v352, %v357
      %v373 = vadd.f32 %v353, %v357
      %v374 = vadd.f32 %v354, %v357
      %v375 = vmax.f32 %v359, 0.0
      %v376 = vmax.f32 %v360, 0.0
      %v377 = vmax.f32 %v361, 0.0
      %v378 = vmax.f32 %v362, 0.0
      %v379 = vmax.f32 %v363, 0.0
      %v380 = vmax.f32 %v364, 0.0
      %v381 = vmax.f32 %v365, 0.0
      %v382 = vmax.f32 %v366, 0.0
      %v383 = vmax.f32 %v367, 0.0
      %v384 = vmax.f32 %v368, 0.0
      %v385 = vmax.f32 %v369, 0.0
      %v386 = vmax.f32 %v370, 0.0
      %v387 = vmax.f32 %v371, 0.0
      %v388 = vmax.f32 %v372, 0.0
      %v389 = vmax.f32 %v373, 0.0
      %v390 = vmax.f32 %v374, 0.0
      %v391 = vld [vmem:[#allocation3] sm:$0xff]
      %v392 = vld [vmem:[#allocation7] sm:$0xf]
      %v393 = vpack.c.bf16 %v376, %v375
      %v394 = vpack.c.bf16 %v378, %v377
      %v395 = vpack.c.bf16 %v380, %v379
      %v396 = vpack.c.bf16 %v382, %v381
      %v397 = vpack.c.bf16 %v384, %v383
      %v398 = vpack.c.bf16 %v386, %v385
      %v399 = vpack.c.bf16 %v388, %v387
      %v400 = vpack.c.bf16 %v390, %v389
      %401 = vmatpush.bf16.msra.mxu0 %v400
      %402 = vmatpush.bf16.msra.mxu0 %v399
      %403 = vmatpush.bf16.msra.mxu0 %v398
      %404 = vmatpush.bf16.msra.mxu0 %v397
      %405 = vmatpush.bf16.msra.mxu0 %v396
      %406 = vmatpush.bf16.msra.mxu0 %v395
      %407 = vmatpush.bf16.msra.mxu0 %v394
      %408 = vmatpush.bf16.msra.mxu0 %v393
      %409 = vmatmul.bf16.gmra.mxu0 %v392
      %v410 = vpop.f32.mrf.mxu0
      %v411 = vadd.f32 0.0, %v410
      %v412 = vpop.f32.mrf.mxu0
      %413 = vdwg.mxu0
      %v414 = vadd.f32 %v391, %v411
      %415 = vst [vmem:[#allocation3] sm:$0xff] %v414
    $region53: #{tpu_custom_call.1} parent=1 // pred_fallthru
      _
    // Predicated region
    $region54: #{tpu_custom_call.1} parent=1 // pred_check
      _
    $region55: #{tpu_custom_call.1} parent=1 // pred_check_branch
      %417 = sbr.rel (%p87) target = $region57
    $region56: #{tpu_custom_call.1} parent=1 // pred_region
      %v418 = vld [vmem:[#allocation3] sm:$0xff]
      %v419 = vpack.c.bf16 %v418, %v418
      %v420 = vld [vmem:[#allocation10] sm:$0xf]
      %v421 = vld [vmem:[#allocation10 + $0x4] sm:$0xf]
      %v422 = vld [vmem:[#allocation10 + $0x8] sm:$0xf]
      %v423 = vld [vmem:[#allocation10 + $0xc] sm:$0xf]
      %v424 = vld [vmem:[#allocation10 + $0x10] sm:$0xf]
      %v425 = vld [vmem:[#allocation10 + $0x14] sm:$0xf]
      %v426 = vld [vmem:[#allocation10 + $0x18] sm:$0xf]
      %v427 = vld [vmem:[#allocation10 + $0x1c] sm:$0xf]
      %v428 = vld [vmem:[#allocation10 + $0x20] sm:$0xf]
      %v429 = vld [vmem:[#allocation10 + $0x24] sm:$0xf]
      %v430 = vld [vmem:[#allocation10 + $0x28] sm:$0xf]
      %v431 = vld [vmem:[#allocation10 + $0x2c] sm:$0xf]
      %v432 = vld [vmem:[#allocation10 + $0x30] sm:$0xf]
      %v433 = vld [vmem:[#allocation10 + $0x34] sm:$0xf]
      %v434 = vld [vmem:[#allocation10 + $0x38] sm:$0xf]
      %v435 = vld [vmem:[#allocation10 + $0x3c] sm:$0xf]
      %v436 = vld [vmem:[%s5] sm:$0x1]
      %v438 = vperm.slane %v436, 0
      %v456 = vunpack.c.l.b16 %v420
      %v457 = vunpack.c.l.b16 %v421
      %v458 = vunpack.c.l.b16 %v422
      %v459 = vunpack.c.l.b16 %v423
      %v460 = vunpack.c.l.b16 %v424
      %v461 = vunpack.c.l.b16 %v425
      %v462 = vunpack.c.l.b16 %v426
      %v463 = vunpack.c.l.b16 %v427
      %v464 = vunpack.c.l.b16 %v428
      %v465 = vunpack.c.l.b16 %v429
      %v466 = vunpack.c.l.b16 %v430
      %v467 = vunpack.c.l.b16 %v431
      %v468 = vunpack.c.l.b16 %v432
      %v469 = vunpack.c.l.b16 %v433
      %v470 = vunpack.c.l.b16 %v434
      %v471 = vunpack.c.l.b16 %v435
      %v472 = vpack.c.b16 %v457, %v456
      %v473 = vpack.c.b16 %v459, %v458
      %v474 = vpack.c.b16 %v461, %v460
      %v475 = vpack.c.b16 %v463, %v462
      %v476 = vpack.c.b16 %v465, %v464
      %v477 = vpack.c.b16 %v467, %v466
      %v478 = vpack.c.b16 %v469, %v468
      %v479 = vpack.c.b16 %v471, %v470
      %488 = vmatpush.bf16.msra.mxu0 %v479
      %489 = vmatpush.bf16.msra.mxu0 %v478
      %490 = vmatpush.bf16.msra.mxu0 %v477
      %491 = vmatpush.bf16.msra.mxu0 %v476
      %492 = vmatpush.bf16.msra.mxu0 %v475
      %493 = vmatpush.bf16.msra.mxu0 %v474
      %494 = vmatpush.bf16.msra.mxu0 %v473
      %495 = vmatpush.bf16.msra.mxu0 %v472
      %496 = vmatmul.bf16.gmra.mxu0 %v419
      %v497 = vpop.f32.mrf.mxu0
      %v498 = vadd.f32 %v438, %v497
      %v499 = vpop.f32.mrf.mxu0
      %500 = vdwg.mxu0
      %501 = vst [vmem:[#allocation12] sm:$0xff] %v498
    $region57: #{tpu_custom_call.1} parent=1 // pred_fallthru
      _
    // Predicated region
    $region58: #{tpu_custom_call.1} parent=1 // pred_check
      _
    $region59: #{tpu_custom_call.1} parent=1 // pred_check_branch
      %503 = sbr.rel (0) target = $region61
    $region60: #{tpu_custom_call.1} parent=1 // pred_region
      %505 = vsyncadd [#allocation6], 0
      %s507 = sshll.u32 [#allocation12], 4
      %s508 = int_to_ptr.vmem [resolvable:$true] %s507
      %s509 = sshll.u32 %s6, 4
      %s510 = int_to_ptr.hbm [resolvable:$true] %s509
      %512 = dma.vmem_to_hbm [thread:$0]  %s508, 128, %s510, [#allocation6]
    $region61: #{tpu_custom_call.1} parent=1 // pred_fallthru
      _
    // Predicated region
    $region62: #{tpu_custom_call.1} parent=1 // pred_check
      _
    $region63: #{tpu_custom_call.1} parent=1 // pred_check_branch
      %514 = sbr.rel (0) target = $region65
    $region64: #{tpu_custom_call.1} parent=1 // pred_region
      %516 = dma.done [#allocation6], 128
    $region65: #{tpu_custom_call.1} parent=1 // pred_fallthru
      _
    %517 = vsyncpa [#allocation5], 1
    %518 = vsyncpa [#allocation8], 1
    %519 = vsyncpa [#allocation11], 1
    %520 = vsyncpa [#allocation6], 1

</llo_original>
